<compile_context>
chip_gen: v6e
topology: v6e:2x2x1
jax: 0.10.0
libtpu: 0.0.40
codegen_flags: <defaults>
</compile_context>

<pallas_src>
import jax
import jax.numpy as jnp
import numpy as np
from jax.experimental import pallas as pl
from jax.experimental.pallas import tpu as pltpu


def _roialign_kernel(idx_ref, feat_ref, wy_ref, wxz_ref, o_ref):
    # idx_ref : scalar-prefetch SMEM ref with per-ROI batch indices (used only in index_map)
    # feat_ref: (1, c_block, H, W*T)  feature tile of the ROI's batch sample
    # wy_ref  : (1, ph, H)            interpolation weights along H (float32)
    # wxz_ref : (1, pw*pd, W*T)       combined interpolation weights along W and T (feat dtype)
    # o_ref   : (1, c_block, ph, pw*pd)
    feat = feat_ref[0]                                   # (Ct, H, WT)
    wy = wy_ref[0]                                       # (ph, H) f32
    wxz = wxz_ref[0]                                     # (P, WT)
    Ct, H, WT = feat.shape
    P = wxz.shape[0]
    ph = wy.shape[0]

    # Stage 1: contract the large W*T axis as ONE flat 2-D MXU matmul.
    #   (Ct*H, WT) x (P, WT)^T -> (Ct*H, P), f32 accumulation.
    feat2d = feat.reshape(Ct * H, WT)
    m1 = jax.lax.dot_general(
        feat2d, wxz,
        dimension_numbers=(((1,), (1,)), ((), ())),
        preferred_element_type=jnp.float32)              # (Ct*H, P)
    m1 = m1.reshape(Ct, H, P)

    # Stage 2: contract H (tiny; ~ph/WT of stage-1 FLOPs), batched over channels.
    wy_b = jnp.broadcast_to(wy[None], (Ct, ph, H)).astype(jnp.float32)
    out = jax.lax.dot_general(
        wy_b, m1,
        dimension_numbers=(((2,), (1,)), ((0,), (0,))),
        preferred_element_type=jnp.float32)              # (Ct, ph, P)

    o_ref[0] = out.astype(o_ref.dtype)


def _axis_weights(c_lo, c_hi, dim, pool):
    """TF crop_and_resize style 1-D linear interpolation weights.

    c_lo, c_hi: [N] normalized start/end coordinates of the box along this axis.
    Returns [N, pool, dim] float32; rows for out-of-range samples are all zero,
    which (since extrapolation_value == 0) reproduces the extrapolation behaviour.
    """
    c_lo = c_lo.astype(jnp.float32)
    c_hi = c_hi.astype(jnp.float32)
    if pool > 1:
        scale = (c_hi - c_lo) * (dim - 1) / (pool - 1)                      # [N]
        coords = (c_lo[:, None] * (dim - 1)
                  + jnp.arange(pool, dtype=jnp.float32)[None, :] * scale[:, None])
    else:
        coords = 0.5 * (c_lo + c_hi)[:, None] * (dim - 1)
    valid = (coords >= 0.0) & (coords <= float(dim - 1))
    cc = jnp.clip(coords, 0.0, float(dim - 1))
    lo = jnp.floor(cc)
    frac = cc - lo
    lo_i = lo.astype(jnp.int32)
    hi_i = jnp.minimum(lo_i + 1, dim - 1)
    grid = jnp.arange(dim, dtype=jnp.int32)[None, None, :]
    w = ((grid == lo_i[..., None]).astype(jnp.float32) * (1.0 - frac[..., None])
         + (grid == hi_i[..., None]).astype(jnp.float32) * frac[..., None])
    return jnp.where(valid[..., None], w, 0.0)                               # [N, pool, dim]


def _box_axis_weights(rois, image_size, H, W, T, ph, pw, pd):
    boxes = rois.astype(jnp.float32) / float(image_size)
    # same column permutation as the PyTorch module:
    # rois = (y1, x1, z1, y2, x2, z2) -> boxes = (x1, y1, x2, y2, z1, z2),
    # interpreted by crop_and_resize as (y1', x1', y2', x2', z1', z2') over (H, W, T).
    boxes = boxes[:, jnp.array([1, 0, 4, 3, 2, 5])]
    b_y1, b_x1, b_y2, b_x2, b_z1, b_z2 = (boxes[:, i] for i in range(6))
    wy = _axis_weights(b_y1, b_y2, H, ph)   # [N, ph, H]
    wx = _axis_weights(b_x1, b_x2, W, pw)   # [N, pw, W]
    wz = _axis_weights(b_z1, b_z2, T, pd)   # [N, pd, T]
    return wy, wx, wz


def _pick_c_block(C, per_channel_bytes, budget_bytes=24 * (1 << 20)):
    """Largest divisor of C whose double-buffered feature tile fits the budget."""
    max_c = max(1, budget_bytes // (2 * max(1, per_channel_bytes)))
    if C <= max_c:
        return C
    for cb in range(int(max_c), 0, -1):
        if C % cb == 0:
            return cb
    return 1


class RoiAlign:
    def __init__(self, pool_size_h, pool_size_w, pool_size_d, image_size):
        self.pool_size_h = pool_size_h
        self.pool_size_w = pool_size_w
        self.pool_size_d = pool_size_d
        self.image_size = image_size

    def __call__(self, features, rois, rois_indices):
        ph, pw, pd = self.pool_size_h, self.pool_size_w, self.pool_size_d
        B, C, H, W, T = features.shape
        N = rois.shape[0]
        WT = W * T
        P = pw * pd

        wy, wx, wz = _box_axis_weights(rois, self.image_size, H, W, T, ph, pw, pd)
        # combined W/T weights (cheap setup glue; heavy reductions run in-kernel)
        wxz = (wx[:, :, None, :, None] * wz[:, None, :, None, :]).reshape(N, P, WT)
        wxz = wxz.astype(features.dtype)          # match feature dtype for the MXU

        # keep features in their input dtype (no f32 upcast pass over HBM)
        feat_r = features.reshape(B, C, H, WT)
        feat_item = jnp.dtype(feat_r.dtype).itemsize
        out_item = feat_item
        wxz_item = jnp.dtype(wxz.dtype).itemsize

        # clamp batch indices (avoid OOB DMA), then sort ROIs by batch index so
        # consecutive grid steps map to the same feature block and Pallas skips the DMA.
        idx = jnp.clip(rois_indices.astype(jnp.int32), 0, B - 1)
        order = jnp.argsort(idx)
        inv_order = jnp.argsort(order)
        idx_s = idx[order]
        wy_s = wy[order]
        wxz_s = wxz[order]

        # optional C tiling to bound VMEM (important on v7x: 64 MiB physical)
        c_block = _pick_c_block(C, H * WT * feat_item)
        n_cb = C // c_block

        vmem_needed = (2 * c_block * H * WT * feat_item            # feature tile, double-buffered
                       + 2 * (ph * H * 4 + P * WT * wxz_item)      # weight tiles
                       + 2 * c_block * ph * P * out_item           # output tile
                       + (2 << 20))                                # slack
        vmem_limit = int(min(64 * (1 << 20), max(32 * (1 << 20), vmem_needed)))

        cost = pl.CostEstimate(
            flops=int(2 * N * C * H * WT * P + 2 * N * C * ph * H * P),
            transcendentals=0,
            bytes_accessed=int(B * C * H * WT * feat_item
                               + N * (ph * H * 4 + P * WT * wxz_item
                                      + C * ph * P * out_item)),
        )

        out = pl.pallas_call(
            _roialign_kernel,
            out_shape=jax.ShapeDtypeStruct((N, C, ph, P), features.dtype),
            grid_spec=pltpu.PrefetchScalarGridSpec(
                num_scalar_prefetch=1,
                # C-tiles outermost, ROIs innermost: the feature block index
                # (idx_s[n], c) repeats across consecutive ROIs of the same batch
                # sample, so its DMA is skipped.
                grid=(n_cb, N),
                in_specs=[
                    pl.BlockSpec((1, c_block, H, WT),
                                 lambda c, n, idx_ref: (idx_ref[n], c, 0, 0)),
                    pl.BlockSpec((1, ph, H), lambda c, n, idx_ref: (n, 0, 0)),
                    pl.BlockSpec((1, P, WT), lambda c, n, idx_ref: (n, 0, 0)),
                ],
                out_specs=pl.BlockSpec((1, c_block, ph, P),
                                       lambda c, n, idx_ref: (n, c, 0, 0)),
            ),
            compiler_params=pltpu.CompilerParams(
                dimension_semantics=("parallel", "parallel"),
                vmem_limit_bytes=vmem_limit),
            cost_estimate=cost,
        )(idx_s, feat_r, wy_s, wxz_s)

        out = out[inv_order]
        return out.reshape(N, C, ph, pw, pd)


def roi_align_reference(features, rois, rois_indices, ph, pw, pd, image_size):
    """Pure-JAX reference (same semantics) for validation."""
    B, C, H, W, T = features.shape
    wy, wx, wz = _box_axis_weights(rois, image_size, H, W, T, ph, pw, pd)
    gathered = features.astype(jnp.float32)[jnp.clip(rois_indices.astype(jnp.int32), 0, B - 1)]
    return jnp.einsum('nchwt,nih,njw,nkt->ncijk', gathered, wy, wx, wz)


if __name__ == "__main__":
    key = jax.random.PRNGKey(0)
    B, C, H, W, T = 2, 4, 16, 16, 16
    ph, pw, pd = 4, 4, 2
    image_size = 16
    n_rois = 5

    k1, k2, k3, k4 = jax.random.split(key, 4)
    features = jax.random.normal(k1, (B, C, H, W, T), dtype=jnp.float32)
    lo = jax.random.uniform(k2, (n_rois, 3), minval=0.0, maxval=image_size * 0.5)
    span = jax.random.uniform(k3, (n_rois, 3), minval=2.0, maxval=image_size * 0.5)
    hi = jnp.minimum(lo + span, float(image_size))
    # rois ordered (y1, x1, z1, y2, x2, z2)
    rois = jnp.concatenate([lo, hi], axis=1)
    rois_indices = jax.random.randint(k4, (n_rois,), 0, B)

    module = RoiAlign(ph, pw, pd, image_size)
    out = module(features, rois, rois_indices)
    out = jax.block_until_ready(out)

    assert out.shape == (n_rois, C, ph, pw, pd)
    ref = roi_align_reference(features, rois, rois_indices, ph, pw, pd, image_size)
    np.testing.assert_allclose(np.asarray(out), np.asarray(ref), rtol=1e-2, atol=1e-2)
    print("KERNEL_OK")
</pallas_src>

<mosaic_0001>
module attributes {stable_mosaic.version = 11 : i64} {
  func.func @_roialign_kernel(%arg0: i32, %arg1: i32, %arg2: memref<5xi32, #tpu.memory_space<smem>>, %arg3: memref<1x4x16x256xf32, #tpu.memory_space<vmem>>, %arg4: memref<1x4x16xf32, #tpu.memory_space<vmem>>, %arg5: memref<1x8x256xf32, #tpu.memory_space<vmem>>, %arg6: memref<1x4x4x8xf32, #tpu.memory_space<vmem>>) attributes {dimension_semantics = [#tpu.dimension_semantics<parallel>, #tpu.dimension_semantics<parallel>], iteration_bounds = array<i64: 1, 5>, scalar_prefetch = 1 : i64, scratch_operands = 0 : i64, tpu.core_type = #tpu.core_type<tc>, window_params = [{transform_indices = @transform_0, window_bounds = array<i64: 1, 4, 16, 256>}, {transform_indices = @transform_1, window_bounds = array<i64: 1, 4, 16>}, {transform_indices = @transform_2, window_bounds = array<i64: 1, 8, 256>}, {transform_indices = @transform_3, window_bounds = array<i64: 1, 4, 4, 8>}]} {
    %c0 = arith.constant 0 : index
    %c0_0 = arith.constant 0 : index
    %c0_1 = arith.constant 0 : index
    %c0_2 = arith.constant 0 : index
    %0 = vector.load %arg3[%c0, %c0_0, %c0_1, %c0_2] : memref<1x4x16x256xf32, #tpu.memory_space<vmem>>, vector<1x4x16x256xf32>
    %1 = vector.shape_cast %0 : vector<1x4x16x256xf32> to vector<4x16x256xf32>
    %c0_3 = arith.constant 0 : index
    %c0_4 = arith.constant 0 : index
    %c0_5 = arith.constant 0 : index
    %2 = vector.load %arg4[%c0_3, %c0_4, %c0_5] : memref<1x4x16xf32, #tpu.memory_space<vmem>>, vector<1x4x16xf32>
    %3 = vector.shape_cast %2 : vector<1x4x16xf32> to vector<4x16xf32>
    %c0_6 = arith.constant 0 : index
    %c0_7 = arith.constant 0 : index
    %c0_8 = arith.constant 0 : index
    %4 = vector.load %arg5[%c0_6, %c0_7, %c0_8] : memref<1x8x256xf32, #tpu.memory_space<vmem>>, vector<1x8x256xf32>
    %5 = vector.shape_cast %4 : vector<1x8x256xf32> to vector<8x256xf32>
    %6 = vector.shape_cast %1 : vector<4x16x256xf32> to vector<64x256xf32>
    %cst = arith.constant dense<0.000000e+00> : vector<64x8xf32>
    %7 = tpu.matmul %6, %5, %cst {dimension_numbers = #tpu.dot_dimension_numbers<[1], [1], [0], [0], [0, 0, 1, 0], [], []>} : vector<64x256xf32>, vector<8x256xf32>, vector<64x8xf32> -> vector<64x8xf32>
    %8 = vector.shape_cast %7 : vector<64x8xf32> to vector<4x16x8xf32>
    %9 = vector.shape_cast %3 : vector<4x16xf32> to vector<1x4x16xf32>
    %10 = vector.shape_cast %9 : vector<1x4x16xf32> to vector<1x4x16xf32>
    %11 = vector.broadcast %10 : vector<1x4x16xf32> to vector<4x4x16xf32>
    %cst_9 = arith.constant dense<0.000000e+00> : vector<4x4x8xf32>
    %12 = tpu.matmul %11, %8, %cst_9 {dimension_numbers = #tpu.dot_dimension_numbers<[2], [1], [1], [2], [0, 0, 0, 1, 1, 2], [0], [0]>} : vector<4x4x16xf32>, vector<4x16x8xf32>, vector<4x4x8xf32> -> vector<4x4x8xf32>
    %c0_10 = arith.constant 0 : index
    %c0_11 = arith.constant 0 : index
    %c0_12 = arith.constant 0 : index
    %c0_13 = arith.constant 0 : index
    %13 = vector.load %arg6[%c0_10, %c0_11, %c0_12, %c0_13] : memref<1x4x4x8xf32, #tpu.memory_space<vmem>>, vector<1x4x4x8xf32>
    %14 = vector.shape_cast %13 : vector<1x4x4x8xf32> to vector<4x4x8xf32>
    %15 = vector.shape_cast %12 : vector<4x4x8xf32> to vector<1x4x4x8xf32>
    tpu.vector_store %arg6[%c0_10, %c0_11, %c0_12, %c0_13], %15 {strides = array<i32>} : memref<1x4x4x8xf32, #tpu.memory_space<vmem>>, vector<1x4x4x8xf32>,
    return
  }
  func.func @transform_0(%arg0: i32, %arg1: i32, %arg2: memref<5xi32, #tpu.memory_space<smem>>) -> (i32, i32, i32, i32) {
    %0 = arith.index_cast %arg1 : i32 to index
    %1 = memref.load %arg2[%0] : memref<5xi32, #tpu.memory_space<smem>>
    %c0_i32 = arith.constant 0 : i32
    %c0_i32_0 = arith.constant 0 : i32
    %c0_i32_1 = arith.constant 0 : i32
    return %1, %arg0, %c0_i32, %c0_i32_0 : i32, i32, i32, i32
  }
  func.func @transform_1(%arg0: i32, %arg1: i32, %arg2: memref<5xi32, #tpu.memory_space<smem>>) -> (i32, i32, i32) {
    %c0_i32 = arith.constant 0 : i32
    %c0_i32_0 = arith.constant 0 : i32
    %c0_i32_1 = arith.constant 0 : i32
    return %arg1, %c0_i32, %c0_i32_0 : i32, i32, i32
  }
  func.func @transform_2(%arg0: i32, %arg1: i32, %arg2: memref<5xi32, #tpu.memory_space<smem>>) -> (i32, i32, i32) {
    %c0_i32 = arith.constant 0 : i32
    %c0_i32_0 = arith.constant 0 : i32
    %c0_i32_1 = arith.constant 0 : i32
    return %arg1, %c0_i32, %c0_i32_0 : i32, i32, i32
  }
  func.func @transform_3(%arg0: i32, %arg1: i32, %arg2: memref<5xi32, #tpu.memory_space<smem>>) -> (i32, i32, i32, i32) {
    %c0_i32 = arith.constant 0 : i32
    %c0_i32_0 = arith.constant 0 : i32
    %c0_i32_1 = arith.constant 0 : i32
    return %arg1, %arg0, %c0_i32, %c0_i32_0 : i32, i32, i32, i32
  }
}

</mosaic_0001>

<llo_original>
// kernel: tpu_custom_call.1
$region0: #{tpu_custom_call.1}
  #allocation0 [shape = 'u32[]', space=smem, size = 0x4, offset = 0x4, fixed_abs, tag = 'smem constant byte address 0x4 - core index']
  #allocation1 [shape = 'u32[144,128]{1,0:T(1,128)}', space=vmem, size = 0x12000, scoped, tag = 'internal scratch']
  #allocation2 [shape = 's32[1]{0}', space=sflag, size = 0x4, scoped, tag = 'scoped memory for tpu_custom_call.1']
  #allocation3 [shape = 'u8[512]{0}', space=smem, size = 0x200, scoped, tag = 'prefetched SMEM operand 0']
  %s0 = inlined_call_operand.hbm [shape: s32[5], index: 0, kind: input, shape index: {}]
  %s1 = inlined_call_operand.hbm [shape: f32[2,4,16,256], index: 1, kind: input, shape index: {}]
  %s2 = inlined_call_operand.hbm [shape: f32[5,4,16], index: 2, kind: input, shape index: {}]
  %s3 = inlined_call_operand.hbm [shape: f32[5,8,256], index: 3, kind: input, shape index: {}]
  %s4 = inlined_call_operand.hbm [shape: f32[5,4,4,8], index: 4, kind: output, shape index: {}]
  %s5 = sld [smem:[#allocation0]]
  $region57: #{tpu_custom_call.1} parent=0
    _
  %s7 = ssub.s32 1, %s5
  %s8 = scalar_select 0, %s7, %s5
  %10 = dma.hbm_to_smem %s0, 16, [#allocation3], [#allocation2]
  %11 = dma.done [#allocation2], 16
  %12 = sfence
  $region1: #{tpu_custom_call.1} parent=0
    #allocation4 [shape = 'u8[131072]{0}', space=vmem, size = 0x20000, scoped, tag = 'input window, operand 1']
    #allocation5 [shape = 's32[2]{0}', space=sflag, size = 0x8, scoped, tag = 'scoped memory for tpu_custom_call.1']
    #allocation6 [shape = 's32[2]{0}', space=sflag, size = 0x8, scoped, tag = 'scoped memory for tpu_custom_call.1']
    #allocation7 [shape = 'u8[4096]{0}', space=vmem, size = 0x1000, scoped, tag = 'input window, operand 2']
    #allocation8 [shape = 's32[2]{0}', space=sflag, size = 0x8, scoped, tag = 'scoped memory for tpu_custom_call.1']
    #allocation9 [shape = 'u8[16384]{0}', space=vmem, size = 0x4000, scoped, tag = 'input window, operand 3']
    #allocation10 [shape = 'u8[16384]{0}', space=vmem, size = 0x4000, scoped, tag = 'output window, operand 0']
    %13 = vsyncpa [#allocation5], 0
    %s14 = scalar_lea.sflag [#allocation5], 1
    %15 = vsyncpa %s14, 0
    %16 = vsyncpa [#allocation8], 0
    %s17 = scalar_lea.sflag [#allocation8], 1
    %18 = vsyncpa %s17, 0
    %19 = vsyncpa [#allocation6], 0
    %s20 = scalar_lea.sflag [#allocation6], 1
    %21 = vsyncpa %s20, 0
    loop: start=0, step=1, limit=7
    $region2: #{tpu_custom_call.1} parent=1 // loop_pre_header
      _
    $region3: #{tpu_custom_call.1} parent=1 // loop_header
      %s23 = sphi 0, %s27
      %p24 = scmp.ge.s32.totalorder %s23, 7
      %s30 = sphi 0, %s42
      %s31 = sphi 0, %s38
      %s32 = sphi 0, %s30
      %s33 = sphi 0, %s31
      %s34 = sphi 0, %s32
      %s35 = sphi 0, %s33
      %s49 = sphi 0, %s51
      %s52 = sphi 0, %s49
      %s53 = sphi 0, %s52
      %s69 = sphi 0, %s53
      %s75 = sphi 0, %s77
      %s78 = sphi 0, %s75
      %s79 = sphi 0, %s78
      %s95 = sphi 0, %s79
      %s101 = sphi 0, %s103
      %s104 = sphi 0, %s101
      %s105 = sphi 0, %s104
      %s121 = sphi 0, %s105
      %s129 = sphi 0, %s131
      %s132 = sphi 0, %s129
      %s133 = sphi 0, %s132
      %s149 = sphi 0, %s133
    $region4: #{tpu_custom_call.1} parent=1 // loop_header_branch
      %26 = sbr.rel (%p24) target = $region8
    $region5: #{tpu_custom_call.1} parent=1 // loop_body
      %s28 = ssub.s32 %s23, 1
      %s29 = ssub.s32 %s23, 2
      %s36 = sadd.s32 1, %s31
      %p37 = scmp.ge.s32.totalorder %s36, 5
      %s38 = scalar_select %p37, 0, %s36
      %s39 = sadd.s32 1, %s30
      %s40 = scalar_select %p37, %s39, %s30
      %p41 = scmp.ge.s32.totalorder %s40, 1
      %s42 = scalar_select %p41, 0, %s40
      %s43 = sld [smem:[#allocation3 + %s31]]
      %s44 = sld [smem:[#allocation3 + %s38]]
      %s45 = ssub.s32 %s43, %s44
      %s46 = ssub.s32 %s30, %s42
      %s47 = sor.u32 %s45, %s46
      %p48 = scmp.eq.s32.totalorder %s47, 0
      %s50 = sadd.s32 %s49, 1
      %s51 = scalar_select %p48, %s49, %s50
      %p54 = pneg %p48
      %p55 = scmp.eq.s32.totalorder %s23, 4
      %p56 = por %p54, %p55
      %p57 = scmp.ne.s32.totalorder %s49, %s52
      %p58 = scmp.eq.s32.totalorder %s23, 0
      %p59 = por %p57, %p58
      %p60 = scmp.ne.s32.totalorder %s49, %s52
      %p61 = scmp.eq.s32.totalorder %s28, 4
      %p62 = por %p60, %p61
      %p63 = scmp.ne.s32.totalorder %s52, %s53
      %p64 = scmp.eq.s32.totalorder %s28, 0
      %p65 = por %p63, %p64
      %p66 = scmp.ne.s32.totalorder %s52, %s53
      %p67 = scmp.eq.s32.totalorder %s29, 4
      %p68 = por %p66, %p67
      %p70 = scmp.ne.s32.totalorder %s53, %s69
      %p71 = scmp.eq.s32.totalorder %s29, 0
      %p72 = por %p70, %p71
      %s73 = ssub.s32 %s31, %s38
      %p74 = scmp.eq.s32.totalorder %s73, 0
      %s76 = sadd.s32 %s75, 1
      %s77 = scalar_select %p74, %s75, %s76
      %p80 = pneg %p74
      %p81 = scmp.eq.s32.totalorder %s23, 4
      %p82 = por %p80, %p81
      %p83 = scmp.ne.s32.totalorder %s75, %s78
      %p84 = scmp.eq.s32.totalorder %s23, 0
      %p85 = por %p83, %p84
      %p86 = scmp.ne.s32.totalorder %s75, %s78
      %p87 = scmp.eq.s32.totalorder %s28, 4
      %p88 = por %p86, %p87
      %p89 = scmp.ne.s32.totalorder %s78, %s79
      %p90 = scmp.eq.s32.totalorder %s28, 0
      %p91 = por %p89, %p90
      %p92 = scmp.ne.s32.totalorder %s78, %s79
      %p93 = scmp.eq.s32.totalorder %s29, 4
      %p94 = por %p92, %p93
      %p96 = scmp.ne.s32.totalorder %s79, %s95
      %p97 = scmp.eq.s32.totalorder %s29, 0
      %p98 = por %p96, %p97
      %s99 = ssub.s32 %s31, %s38
      %p100 = scmp.eq.s32.totalorder %s99, 0
      %s102 = sadd.s32 %s101, 1
      %s103 = scalar_select %p100, %s101, %s102
      %p106 = pneg %p100
      %p107 = scmp.eq.s32.totalorder %s23, 4
      %p108 = por %p106, %p107
      %p109 = scmp.ne.s32.totalorder %s101, %s104
      %p110 = scmp.eq.s32.totalorder %s23, 0
      %p111 = por %p109, %p110
      %p112 = scmp.ne.s32.totalorder %s101, %s104
      %p113 = scmp.eq.s32.totalorder %s28, 4
      %p114 = por %p112, %p113
      %p115 = scmp.ne.s32.totalorder %s104, %s105
      %p116 = scmp.eq.s32.totalorder %s28, 0
      %p117 = por %p115, %p116
      %p118 = scmp.ne.s32.totalorder %s104, %s105
      %p119 = scmp.eq.s32.totalorder %s29, 4
      %p120 = por %p118, %p119
      %p122 = scmp.ne.s32.totalorder %s105, %s121
      %p123 = scmp.eq.s32.totalorder %s29, 0
      %p124 = por %p122, %p123
      %s125 = ssub.s32 %s31, %s38
      %s126 = ssub.s32 %s30, %s42
      %s127 = sor.u32 %s125, %s126
      %p128 = scmp.eq.s32.totalorder %s127, 0
      %s130 = sadd.s32 %s129, 1
      %s131 = scalar_select %p128, %s129, %s130
      %p134 = pneg %p128
      %p135 = scmp.eq.s32.totalorder %s23, 4
      %p136 = por %p134, %p135
      %p137 = scmp.ne.s32.totalorder %s129, %s132
      %p138 = scmp.eq.s32.totalorder %s23, 0
      %p139 = por %p137, %p138
      %p140 = scmp.ne.s32.totalorder %s129, %s132
      %p141 = scmp.eq.s32.totalorder %s28, 4
      %p142 = por %p140, %p141
      %p143 = scmp.ne.s32.totalorder %s132, %s133
      %p144 = scmp.eq.s32.totalorder %s28, 0
      %p145 = por %p143, %p144
      %p146 = scmp.ne.s32.totalorder %s132, %s133
      %p147 = scmp.eq.s32.totalorder %s29, 4
      %p148 = por %p146, %p147
      %p150 = scmp.ne.s32.totalorder %s133, %s149
      %p151 = scmp.eq.s32.totalorder %s29, 0
      %p152 = por %p150, %p151
      %p153 = scmp.le.s32.totalorder 1, %s23
      %p154 = scmp.lt.s32.totalorder %s23, 6
      %p155 = pnand %p153, %p154
      %p156 = pneg %p155
      // Predicated region
      $region9: #{tpu_custom_call.1} parent=5 // pred_check
        _
      $region10: #{tpu_custom_call.1} parent=5 // pred_check_branch
        %158 = sbr.rel (%p155) target = $region12
      $region11: #{tpu_custom_call.1} parent=5 // pred_region
        %s159 = ssub.s32 %s23, 1
      $region12: #{tpu_custom_call.1} parent=5 // pred_fallthru
        _
      %p160 = scmp.lt.s32.totalorder %s23, 5
      // Predicated region
      $region13: #{tpu_custom_call.1} parent=5 // pred_check
        %p161 = pneg %p160
      $region14: #{tpu_custom_call.1} parent=5 // pred_check_branch
        %163 = sbr.rel (%p161) target = $region16
      $region15: #{tpu_custom_call.1} parent=5 // pred_region
        // Predicated region
        $region17: #{tpu_custom_call.1} parent=15 // pred_check
          %p164 = pneg %p59
        $region18: #{tpu_custom_call.1} parent=15 // pred_check_branch
          %166 = sbr.rel (%p164) target = $region20
        $region19: #{tpu_custom_call.1} parent=15 // pred_region
          %s167 = sand.u32 %s49, 1
          %s168 = scalar_lea.sflag [#allocation5], %s167
          %s169 = sand.u32 %s49, 1
          %s170 = smul.addr %s169, 128
          %s171 = scalar_lea.vmem [#allocation4], %s170
          %s172 = sld [smem:[#allocation3 + %s31]]
          %s173 = smul.u32 4, %s30
          %s175 = ssub.s32 2048, 2048
          %176 = vsyncadd %s168, %s175
          %s177 = smul.addr %s173, 4
          %s178 = smul.addr %s172, 16
          %s179 = sadd.s32 %s177, %s178
          %s180 = smul.addr %s179, 128
          %s181 = scalar_lea.hbm %s1, %s180
          %s182 = sshll.u32 %s171, 4
          %s183 = int_to_ptr.vmem [resolvable:$true] %s182
          %188 = dma.hbm_to_vmem [thread:$0]  %s181, 2048, %s183, %s168, 256, 256, 16
        $region20: #{tpu_custom_call.1} parent=15 // pred_fallthru
          _
        // Predicated region
        $region21: #{tpu_custom_call.1} parent=15 // pred_check
          %p189 = pneg %p85
        $region22: #{tpu_custom_call.1} parent=15 // pred_check_branch
          %191 = sbr.rel (%p189) target = $region24
        $region23: #{tpu_custom_call.1} parent=15 // pred_region
          %s192 = sand.u32 %s23, 1
          %s193 = scalar_lea.sflag [#allocation8], %s192
          %s194 = sand.u32 %s75, 1
          %s195 = smul.addr %s194, 4
          %s196 = scalar_lea.vmem [#allocation7], %s195
          %s198 = ssub.s32 64, 64
          %199 = vsyncadd %s193, %s198
          %s200 = smul.addr %s31, 64
          %s201 = scalar_lea.hbm %s2, %s200
          %s203 = sshll.u32 %s196, 4
          %s204 = int_to_ptr.vmem [resolvable:$true] %s203
          %206 = dma.hbm_to_vmem [thread:$0]  %s201, 64, %s204, %s193
        $region24: #{tpu_custom_call.1} parent=15 // pred_fallthru
          _
        // Predicated region
        $region25: #{tpu_custom_call.1} parent=15 // pred_check
          %p207 = pneg %p111
        $region26: #{tpu_custom_call.1} parent=15 // pred_check_branch
          %209 = sbr.rel (%p207) target = $region28
        $region27: #{tpu_custom_call.1} parent=15 // pred_region
          %s210 = sand.u32 %s23, 1
          %s211 = scalar_lea.sflag [#allocation8], %s210
          %s212 = sand.u32 %s101, 1
          %s213 = smul.addr %s212, 16
          %s214 = scalar_lea.vmem [#allocation9], %s213
          %s216 = ssub.s32 256, 256
          %217 = vsyncadd %s211, %s216
          %s218 = smul.addr %s31, 2
          %s219 = smul.addr %s218, 128
          %s220 = scalar_lea.hbm %s3, %s219
          %s222 = sshll.u32 %s214, 4
          %s223 = int_to_ptr.vmem [resolvable:$true] %s222
          %225 = dma.hbm_to_vmem [thread:$0]  %s220, 256, %s223, %s211
        $region28: #{tpu_custom_call.1} parent=15 // pred_fallthru
          _
      $region16: #{tpu_custom_call.1} parent=5 // pred_fallthru
        _
      %p226 = scmp.le.s32.totalorder 1, %s23
      %p227 = scmp.lt.s32.totalorder %s23, 6
      %p228 = pnand %p226, %p227
      %p229 = pneg %p228
      // Predicated region
      $region29: #{tpu_custom_call.1} parent=5 // pred_check
        _
      $region30: #{tpu_custom_call.1} parent=5 // pred_check_branch
        %231 = sbr.rel (%p228) target = $region32
      $region31: #{tpu_custom_call.1} parent=5 // pred_region
        %s232 = ssub.s32 %s23, 1
        %s233 = sand.u32 %s52, 1
        %s234 = scalar_lea.sflag [#allocation5], %s233
        %s235 = sand.u32 %s52, 1
        %s236 = smul.addr %s235, 128
        %s237 = scalar_lea.vmem [#allocation4], %s236
        // Predicated region
        $region33: #{tpu_custom_call.1} parent=31 // pred_check
          %p238 = pneg %p65
        $region34: #{tpu_custom_call.1} parent=31 // pred_check_branch
          %240 = sbr.rel (%p238) target = $region36
        $region35: #{tpu_custom_call.1} parent=31 // pred_region
          %241 = dma.done %s234, 2048
        $region36: #{tpu_custom_call.1} parent=31 // pred_fallthru
          _
        %s242 = sand.u32 %s28, 1
        %s243 = scalar_lea.sflag [#allocation8], %s242
        %s244 = sand.u32 %s78, 1
        %s245 = smul.addr %s244, 4
        %s246 = scalar_lea.vmem [#allocation7], %s245
        // Predicated region
        $region37: #{tpu_custom_call.1} parent=31 // pred_check
          %p247 = pneg %p91
        $region38: #{tpu_custom_call.1} parent=31 // pred_check_branch
          %249 = sbr.rel (%p247) target = $region40
        $region39: #{tpu_custom_call.1} parent=31 // pred_region
          %250 = dma.done %s243, 64
        $region40: #{tpu_custom_call.1} parent=31 // pred_fallthru
          _
        %s251 = sand.u32 %s28, 1
        %s252 = scalar_lea.sflag [#allocation8], %s251
        %s253 = sand.u32 %s104, 1
        %s254 = smul.addr %s253, 16
        %s255 = scalar_lea.vmem [#allocation9], %s254
        // Predicated region
        $region41: #{tpu_custom_call.1} parent=31 // pred_check
          %p256 = pneg %p117
        $region42: #{tpu_custom_call.1} parent=31 // pred_check_branch
          %258 = sbr.rel (%p256) target = $region44
        $region43: #{tpu_custom_call.1} parent=31 // pred_region
          %259 = dma.done %s252, 256
        $region44: #{tpu_custom_call.1} parent=31 // pred_fallthru
          _
        %s260 = sand.u32 %s52, 1
        %s261 = scalar_lea.sflag [#allocation5], %s260
        %s262 = sand.u32 %s52, 1
        %s263 = smul.addr %s262, 128
        %s264 = scalar_lea.vmem [#allocation4], %s263
        %p265 = pneg %p65
        %p266 = pneg %p62
        %s267 = sand.u32 %s28, 1
        %s268 = scalar_lea.sflag [#allocation8], %s267
        %s269 = sand.u32 %s78, 1
        %s270 = smul.addr %s269, 4
        %s271 = scalar_lea.vmem [#allocation7], %s270
        %p272 = pneg %p91
        %p273 = pneg %p88
        %s274 = sand.u32 %s28, 1
        %s275 = scalar_lea.sflag [#allocation8], %s274
        %s276 = sand.u32 %s104, 1
        %s277 = smul.addr %s276, 16
        %s278 = scalar_lea.vmem [#allocation9], %s277
        %p279 = pneg %p117
        %p280 = pneg %p114
        %p281 = pneg %p145
        %p282 = pneg %p142
        %s283 = sand.u32 %s132, 1
        %s284 = scalar_lea.sflag [#allocation6], %s283
        %s285 = sand.u32 %s132, 1
        %s286 = smul.addr %s285, 16
        %s287 = scalar_lea.vmem [#allocation10], %s286
        %s288 = sld [smem:[#allocation3 + %s33]]
        %s289 = smul.u32 4, %s32
        %s290 = smul.u32 4, %s32
        %v291 = vld [vmem:[%s237] sm:$0xff]
        %v292 = vld [vmem:[%s237 + $0x8] sm:$0xff]
        %v293 = vld [vmem:[%s237 + $0x10] sm:$0xff]
        %v294 = vld [vmem:[%s237 + $0x18] sm:$0xff]
        %v295 = vld [vmem:[%s237 + $0x20] sm:$0xff]
        %v296 = vld [vmem:[%s237 + $0x28] sm:$0xff]
        %v297 = vld [vmem:[%s237 + $0x30] sm:$0xff]
        %v298 = vld [vmem:[%s237 + $0x38] sm:$0xff]
        %v299 = vld [vmem:[%s237 + $0x40] sm:$0xff]
        %v300 = vld [vmem:[%s237 + $0x48] sm:$0xff]
        %v301 = vld [vmem:[%s237 + $0x50] sm:$0xff]
        %v302 = vld [vmem:[%s237 + $0x58] sm:$0xff]
        %v303 = vld [vmem:[%s237 + $0x60] sm:$0xff]
        %v304 = vld [vmem:[%s237 + $0x68] sm:$0xff]
        %v305 = vld [vmem:[%s237 + $0x70] sm:$0xff]
        %v306 = vld [vmem:[%s237 + $0x78] sm:$0xff]
        %v307 = vld [vmem:[%s246] sm:$0xf]
        %v308 = vld [vmem:[%s255] sm:$0xff]
        %v309 = vld [vmem:[%s255 + $0x8] sm:$0xff]
        %310 = vmatprep.subr.mxu0 0.0
        %311 = vmatpush1.xpose.msra.mxu0 0.0
        %312 = vmatprep.subr.mxu0 0.0
        %313 = vmatpush1.xpose.msra.mxu0 0.0
        %314 = vmatprep.subr.mxu0 0.0
        %315 = vmatpush1.xpose.msra.mxu0 0.0
        %316 = vmatprep.subr.mxu0 0.0
        %317 = vmatpush1.xpose.msra.mxu0 0.0
        %318 = vmatprep.subr.mxu0 0.0
        %319 = vmatpush1.xpose.msra.mxu0 0.0
        %320 = vmatprep.subr.mxu0 0.0
        %321 = vmatpush1.xpose.msra.mxu0 0.0
        %322 = vmatprep.subr.mxu0 0.0
        %323 = vmatpush1.xpose.msra.mxu0 0.0
        %324 = vmatprep.subr.mxu0 0.0
        %325 = vmatpush1.xpose.msra.mxu0 0.0
        %326 = vmatprep.subr.mxu0 0.0
        %327 = vmatpush1.xpose.msra.mxu0 0.0
        %328 = vmatprep.subr.mxu0 0.0
        %329 = vmatpush1.xpose.msra.mxu0 0.0
        %330 = vmatprep.subr.mxu0 0.0
        %331 = vmatpush1.xpose.msra.mxu0 0.0
        %332 = vmatprep.subr.mxu0 0.0
        %333 = vmatpush1.xpose.msra.mxu0 0.0
        %334 = vmatprep.subr.mxu0 0.0
        %335 = vmatpush1.xpose.msra.mxu0 0.0
        %336 = vmatprep.subr.mxu0 0.0
        %337 = vmatpush1.xpose.msra.mxu0 0.0
        %338 = vmatprep.subr.mxu0 0.0
        %339 = vmatpush1.xpose.msra.mxu0 0.0
        %340 = vmatprep.subr.mxu0 %v309
        %341 = vmatpush1.xpose.msra.mxu0 %v308
        %342 = vmatprep.subr.mxu0 0.0
        %343 = vmatpush2.xpose.msra.mxu0 0.0
        %344 = vmatprep.subr.mxu0 0.0
        %345 = vmatpush2.xpose.msra.mxu0 0.0
        %346 = vmatprep.subr.mxu0 0.0
        %347 = vmatpush2.xpose.msra.mxu0 0.0
        %348 = vmatprep.subr.mxu0 0.0
        %349 = vmatpush2.xpose.msra.mxu0 0.0
        %350 = vmatprep.subr.mxu0 0.0
        %351 = vmatpush2.xpose.msra.mxu0 0.0
        %352 = vmatprep.subr.mxu0 0.0
        %353 = vmatpush2.xpose.msra.mxu0 0.0
        %354 = vmatprep.subr.mxu0 0.0
        %355 = vmatpush2.xpose.msra.mxu0 0.0
        %356 = vmatprep.subr.mxu0 0.0
        %357 = vmatpush2.xpose.msra.mxu0 0.0
        %358 = vmatprep.subr.mxu0 0.0
        %359 = vmatpush2.xpose.msra.mxu0 0.0
        %360 = vmatprep.subr.mxu0 0.0
        %361 = vmatpush2.xpose.msra.mxu0 0.0
        %362 = vmatprep.subr.mxu0 0.0
        %363 = vmatpush2.xpose.msra.mxu0 0.0
        %364 = vmatprep.subr.mxu0 0.0
        %365 = vmatpush2.xpose.msra.mxu0 0.0
        %366 = vmatprep.subr.mxu0 0.0
        %367 = vmatpush2.xpose.msra.mxu0 0.0
        %368 = vmatprep.subr.mxu0 0.0
        %369 = vmatpush2.xpose.msra.mxu0 0.0
        %370 = vmatprep.subr.mxu0 0.0
        %371 = vmatpush2.xpose.msra.mxu0 0.0
        %372 = vmatprep.subr.mxu0 0.0
        %373 = vmatpush2.xpose.msra.mxu0 0.0
        %374 = vmatprep.mubr.f32.mxu0 %v292
        %375 = vmatmul.mubr.f32.gmra.mxu0 %v291
        %v376 = vpop.f32.mrf.mxu0
        %v377 = vadd.f32 0.0, %v376
        %v378 = vpop.f32.mrf.mxu0
        %379 = vmatprep.mubr.f32.mxu0 %v294
        %380 = vmatmul.mubr.f32.gmra.mxu0 %v293
        %v381 = vpop.f32.mrf.mxu0
        %v382 = vadd.f32 0.0, %v381
        %v383 = vpop.f32.mrf.mxu0
        %384 = vmatprep.mubr.f32.mxu0 %v296
        %385 = vmatmul.mubr.f32.gmra.mxu0 %v295
        %v386 = vpop.f32.mrf.mxu0
        %v387 = vadd.f32 0.0, %v386
        %v388 = vpop.f32.mrf.mxu0
        %389 = vmatprep.mubr.f32.mxu0 %v298
        %390 = vmatmul.mubr.f32.gmra.mxu0 %v297
        %v391 = vpop.f32.mrf.mxu0
        %v392 = vadd.f32 0.0, %v391
        %v393 = vpop.f32.mrf.mxu0
        %394 = vmatprep.mubr.f32.mxu0 %v300
        %395 = vmatmul.mubr.f32.gmra.mxu0 %v299
        %v396 = vpop.f32.mrf.mxu0
        %v397 = vadd.f32 0.0, %v396
        %v398 = vpop.f32.mrf.mxu0
        %399 = vmatprep.mubr.f32.mxu0 %v302
        %400 = vmatmul.mubr.f32.gmra.mxu0 %v301
        %v401 = vpop.f32.mrf.mxu0
        %v402 = vadd.f32 0.0, %v401
        %v403 = vpop.f32.mrf.mxu0
        %404 = vmatprep.mubr.f32.mxu0 %v304
        %405 = vmatmul.mubr.f32.gmra.mxu0 %v303
        %v406 = vpop.f32.mrf.mxu0
        %v407 = vadd.f32 0.0, %v406
        %v408 = vpop.f32.mrf.mxu0
        %409 = vmatprep.mubr.f32.mxu0 %v306
        %410 = vmatmul.mubr.f32.gmra.mxu0 %v305
        %v411 = vpop.f32.mrf.mxu0
        %v412 = vadd.f32 0.0, %v411
        %v413 = vpop.f32.mrf.mxu0
        %414 = vdwg.mxu0
        %vm415 = vcmask 130048
        %v417 = vsel %vm415, %v307, 0
        %419 = vmatprep.subr.mxu0 0.0
        %420 = vmatpush1.msra.mxu0 0.0
        %421 = vmatprep.subr.mxu0 0.0
        %422 = vmatpush1.msra.mxu0 0.0
        %423 = vmatprep.subr.mxu0 0.0
        %424 = vmatpush1.msra.mxu0 0.0
        %425 = vmatprep.subr.mxu0 0.0
        %426 = vmatpush1.msra.mxu0 0.0
        %427 = vmatprep.subr.mxu0 0.0
        %428 = vmatpush1.msra.mxu0 0.0
        %429 = vmatprep.subr.mxu0 0.0
        %430 = vmatpush1.msra.mxu0 0.0
        %431 = vmatprep.subr.mxu0 0.0
        %432 = vmatpush1.msra.mxu0 0.0
        %433 = vmatprep.subr.mxu0 0.0
        %434 = vmatpush1.msra.mxu0 0.0
        %435 = vmatprep.subr.mxu0 0.0
        %436 = vmatpush1.msra.mxu0 0.0
        %437 = vmatprep.subr.mxu0 0.0
        %438 = vmatpush1.msra.mxu0 0.0
        %439 = vmatprep.subr.mxu0 0.0
        %440 = vmatpush1.msra.mxu0 0.0
        %441 = vmatprep.subr.mxu0 0.0
        %442 = vmatpush1.msra.mxu0 0.0
        %443 = vmatprep.subr.mxu0 0.0
        %444 = vmatpush1.msra.mxu0 0.0
        %445 = vmatprep.subr.mxu0 0.0
        %446 = vmatpush1.msra.mxu0 0.0
        %447 = vmatprep.subr.mxu0 0.0
        %448 = vmatpush1.msra.mxu0 %v382
        %449 = vmatprep.subr.mxu0 0.0
        %450 = vmatpush1.msra.mxu0 %v377
        %451 = vmatprep.subr.mxu0 0.0
        %452 = vmatpush2.msra.mxu0 0.0
        %453 = vmatprep.subr.mxu0 0.0
        %454 = vmatpush2.msra.mxu0 0.0
        %455 = vmatprep.subr.mxu0 0.0
        %456 = vmatpush2.msra.mxu0 0.0
        %457 = vmatprep.subr.mxu0 0.0
        %458 = vmatpush2.msra.mxu0 0.0
        %459 = vmatprep.subr.mxu0 0.0
        %460 = vmatpush2.msra.mxu0 0.0
        %461 = vmatprep.subr.mxu0 0.0
        %462 = vmatpush2.msra.mxu0 0.0
        %463 = vmatprep.subr.mxu0 0.0
        %464 = vmatpush2.msra.mxu0 0.0
        %465 = vmatprep.subr.mxu0 0.0
        %466 = vmatpush2.msra.mxu0 0.0
        %467 = vmatprep.subr.mxu0 0.0
        %468 = vmatpush2.msra.mxu0 0.0
        %469 = vmatprep.subr.mxu0 0.0
        %470 = vmatpush2.msra.mxu0 0.0
        %471 = vmatprep.subr.mxu0 0.0
        %472 = vmatpush2.msra.mxu0 0.0
        %473 = vmatprep.subr.mxu0 0.0
        %474 = vmatpush2.msra.mxu0 0.0
        %475 = vmatprep.subr.mxu0 0.0
        %476 = vmatpush2.msra.mxu0 0.0
        %477 = vmatprep.subr.mxu0 0.0
        %478 = vmatpush2.msra.mxu0 0.0
        %479 = vmatprep.subr.mxu0 0.0
        %480 = vmatpush2.msra.mxu0 0.0
        %481 = vmatprep.subr.mxu0 0.0
        %482 = vmatpush2.msra.mxu0 0.0
        %483 = vmatprep.mubr.f32.mxu0 0.0
        %484 = vmatmul.mubr.f32.gmra.mxu0 %v417
        %v485 = vpop.f32.mrf.mxu0
        %v486 = vadd.f32 0.0, %v485
        %v487 = vpop.f32.mrf.mxu0
        %488 = vdwg.mxu0
        %489 = vmatprep.subr.mxu0 0.0
        %490 = vmatpush1.msra.mxu0 0.0
        %491 = vmatprep.subr.mxu0 0.0
        %492 = vmatpush1.msra.mxu0 0.0
        %493 = vmatprep.subr.mxu0 0.0
        %494 = vmatpush1.msra.mxu0 0.0
        %495 = vmatprep.subr.mxu0 0.0
        %496 = vmatpush1.msra.mxu0 0.0
        %497 = vmatprep.subr.mxu0 0.0
        %498 = vmatpush1.msra.mxu0 0.0
        %499 = vmatprep.subr.mxu0 0.0
        %500 = vmatpush1.msra.mxu0 0.0
        %501 = vmatprep.subr.mxu0 0.0
        %502 = vmatpush1.msra.mxu0 0.0
        %503 = vmatprep.subr.mxu0 0.0
        %504 = vmatpush1.msra.mxu0 0.0
        %505 = vmatprep.subr.mxu0 0.0
        %506 = vmatpush1.msra.mxu0 0.0
        %507 = vmatprep.subr.mxu0 0.0
        %508 = vmatpush1.msra.mxu0 0.0
        %509 = vmatprep.subr.mxu0 0.0
        %510 = vmatpush1.msra.mxu0 0.0
        %511 = vmatprep.subr.mxu0 0.0
        %512 = vmatpush1.msra.mxu0 0.0
        %513 = vmatprep.subr.mxu0 0.0
        %514 = vmatpush1.msra.mxu0 0.0
        %515 = vmatprep.subr.mxu0 0.0
        %516 = vmatpush1.msra.mxu0 0.0
        %517 = vmatprep.subr.mxu0 0.0
        %518 = vmatpush1.msra.mxu0 %v392
        %519 = vmatprep.subr.mxu0 0.0
        %520 = vmatpush1.msra.mxu0 %v387
        %521 = vmatprep.subr.mxu0 0.0
        %522 = vmatpush2.msra.mxu0 0.0
        %523 = vmatprep.subr.mxu0 0.0
        %524 = vmatpush2.msra.mxu0 0.0
        %525 = vmatprep.subr.mxu0 0.0
        %526 = vmatpush2.msra.mxu0 0.0
        %527 = vmatprep.subr.mxu0 0.0
        %528 = vmatpush2.msra.mxu0 0.0
        %529 = vmatprep.subr.mxu0 0.0
        %530 = vmatpush2.msra.mxu0 0.0
        %531 = vmatprep.subr.mxu0 0.0
        %532 = vmatpush2.msra.mxu0 0.0
        %533 = vmatprep.subr.mxu0 0.0
        %534 = vmatpush2.msra.mxu0 0.0
        %535 = vmatprep.subr.mxu0 0.0
        %536 = vmatpush2.msra.mxu0 0.0
        %537 = vmatprep.subr.mxu0 0.0
        %538 = vmatpush2.msra.mxu0 0.0
        %539 = vmatprep.subr.mxu0 0.0
        %540 = vmatpush2.msra.mxu0 0.0
        %541 = vmatprep.subr.mxu0 0.0
        %542 = vmatpush2.msra.mxu0 0.0
        %543 = vmatprep.subr.mxu0 0.0
        %544 = vmatpush2.msra.mxu0 0.0
        %545 = vmatprep.subr.mxu0 0.0
        %546 = vmatpush2.msra.mxu0 0.0
        %547 = vmatprep.subr.mxu0 0.0
        %548 = vmatpush2.msra.mxu0 0.0
        %549 = vmatprep.subr.mxu0 0.0
        %550 = vmatpush2.msra.mxu0 0.0
        %551 = vmatprep.subr.mxu0 0.0
        %552 = vmatpush2.msra.mxu0 0.0
        %553 = vmatprep.mubr.f32.mxu0 0.0
        %554 = vmatmul.mubr.f32.gmra.mxu0 %v417
        %v555 = vpop.f32.mrf.mxu0
        %v556 = vadd.f32 0.0, %v555
        %v557 = vpop.f32.mrf.mxu0
        %558 = vdwg.mxu0
        %559 = vmatprep.subr.mxu0 0.0
        %560 = vmatpush1.msra.mxu0 0.0
        %561 = vmatprep.subr.mxu0 0.0
        %562 = vmatpush1.msra.mxu0 0.0
        %563 = vmatprep.subr.mxu0 0.0
        %564 = vmatpush1.msra.mxu0 0.0
        %565 = vmatprep.subr.mxu0 0.0
        %566 = vmatpush1.msra.mxu0 0.0
        %567 = vmatprep.subr.mxu0 0.0
        %568 = vmatpush1.msra.mxu0 0.0
        %569 = vmatprep.subr.mxu0 0.0
        %570 = vmatpush1.msra.mxu0 0.0
        %571 = vmatprep.subr.mxu0 0.0
        %572 = vmatpush1.msra.mxu0 0.0
        %573 = vmatprep.subr.mxu0 0.0
        %574 = vmatpush1.msra.mxu0 0.0
        %575 = vmatprep.subr.mxu0 0.0
        %576 = vmatpush1.msra.mxu0 0.0
        %577 = vmatprep.subr.mxu0 0.0
        %578 = vmatpush1.msra.mxu0 0.0
        %579 = vmatprep.subr.mxu0 0.0
        %580 = vmatpush1.msra.mxu0 0.0
        %581 = vmatprep.subr.mxu0 0.0
        %582 = vmatpush1.msra.mxu0 0.0
        %583 = vmatprep.subr.mxu0 0.0
        %584 = vmatpush1.msra.mxu0 0.0
        %585 = vmatprep.subr.mxu0 0.0
        %586 = vmatpush1.msra.mxu0 0.0
        %587 = vmatprep.subr.mxu0 0.0
        %588 = vmatpush1.msra.mxu0 %v402
        %589 = vmatprep.subr.mxu0 0.0
        %590 = vmatpush1.msra.mxu0 %v397
        %591 = vmatprep.subr.mxu0 0.0
        %592 = vmatpush2.msra.mxu0 0.0
        %593 = vmatprep.subr.mxu0 0.0
        %594 = vmatpush2.msra.mxu0 0.0
        %595 = vmatprep.subr.mxu0 0.0
        %596 = vmatpush2.msra.mxu0 0.0
        %597 = vmatprep.subr.mxu0 0.0
        %598 = vmatpush2.msra.mxu0 0.0
        %599 = vmatprep.subr.mxu0 0.0
        %600 = vmatpush2.msra.mxu0 0.0
        %601 = vmatprep.subr.mxu0 0.0
        %602 = vmatpush2.msra.mxu0 0.0
        %603 = vmatprep.subr.mxu0 0.0
        %604 = vmatpush2.msra.mxu0 0.0
        %605 = vmatprep.subr.mxu0 0.0
        %606 = vmatpush2.msra.mxu0 0.0
        %607 = vmatprep.subr.mxu0 0.0
        %608 = vmatpush2.msra.mxu0 0.0
        %609 = vmatprep.subr.mxu0 0.0
        %610 = vmatpush2.msra.mxu0 0.0
        %611 = vmatprep.subr.mxu0 0.0
        %612 = vmatpush2.msra.mxu0 0.0
        %613 = vmatprep.subr.mxu0 0.0
        %614 = vmatpush2.msra.mxu0 0.0
        %615 = vmatprep.subr.mxu0 0.0
        %616 = vmatpush2.msra.mxu0 0.0
        %617 = vmatprep.subr.mxu0 0.0
        %618 = vmatpush2.msra.mxu0 0.0
        %619 = vmatprep.subr.mxu0 0.0
        %620 = vmatpush2.msra.mxu0 0.0
        %621 = vmatprep.subr.mxu0 0.0
        %622 = vmatpush2.msra.mxu0 0.0
        %623 = vmatprep.mubr.f32.mxu0 0.0
        %624 = vmatmul.mubr.f32.gmra.mxu0 %v417
        %v625 = vpop.f32.mrf.mxu0
        %v626 = vadd.f32 0.0, %v625
        %v627 = vpop.f32.mrf.mxu0
        %628 = vdwg.mxu0
        %629 = vmatprep.subr.mxu0 0.0
        %630 = vmatpush1.msra.mxu0 0.0
        %631 = vmatprep.subr.mxu0 0.0
        %632 = vmatpush1.msra.mxu0 0.0
        %633 = vmatprep.subr.mxu0 0.0
        %634 = vmatpush1.msra.mxu0 0.0
        %635 = vmatprep.subr.mxu0 0.0
        %636 = vmatpush1.msra.mxu0 0.0
        %637 = vmatprep.subr.mxu0 0.0
        %638 = vmatpush1.msra.mxu0 0.0
        %639 = vmatprep.subr.mxu0 0.0
        %640 = vmatpush1.msra.mxu0 0.0
        %641 = vmatprep.subr.mxu0 0.0
        %642 = vmatpush1.msra.mxu0 0.0
        %643 = vmatprep.subr.mxu0 0.0
        %644 = vmatpush1.msra.mxu0 0.0
        %645 = vmatprep.subr.mxu0 0.0
        %646 = vmatpush1.msra.mxu0 0.0
        %647 = vmatprep.subr.mxu0 0.0
        %648 = vmatpush1.msra.mxu0 0.0
        %649 = vmatprep.subr.mxu0 0.0
        %650 = vmatpush1.msra.mxu0 0.0
        %651 = vmatprep.subr.mxu0 0.0
        %652 = vmatpush1.msra.mxu0 0.0
        %653 = vmatprep.subr.mxu0 0.0
        %654 = vmatpush1.msra.mxu0 0.0
        %655 = vmatprep.subr.mxu0 0.0
        %656 = vmatpush1.msra.mxu0 0.0
        %657 = vmatprep.subr.mxu0 0.0
        %658 = vmatpush1.msra.mxu0 %v412
        %659 = vmatprep.subr.mxu0 0.0
        %660 = vmatpush1.msra.mxu0 %v407
        %661 = vmatprep.subr.mxu0 0.0
        %662 = vmatpush2.msra.mxu0 0.0
        %663 = vmatprep.subr.mxu0 0.0
        %664 = vmatpush2.msra.mxu0 0.0
        %665 = vmatprep.subr.mxu0 0.0
        %666 = vmatpush2.msra.mxu0 0.0
        %667 = vmatprep.subr.mxu0 0.0
        %668 = vmatpush2.msra.mxu0 0.0
        %669 = vmatprep.subr.mxu0 0.0
        %670 = vmatpush2.msra.mxu0 0.0
        %671 = vmatprep.subr.mxu0 0.0
        %672 = vmatpush2.msra.mxu0 0.0
        %673 = vmatprep.subr.mxu0 0.0
        %674 = vmatpush2.msra.mxu0 0.0
        %675 = vmatprep.subr.mxu0 0.0
        %676 = vmatpush2.msra.mxu0 0.0
        %677 = vmatprep.subr.mxu0 0.0
        %678 = vmatpush2.msra.mxu0 0.0
        %679 = vmatprep.subr.mxu0 0.0
        %680 = vmatpush2.msra.mxu0 0.0
        %681 = vmatprep.subr.mxu0 0.0
        %682 = vmatpush2.msra.mxu0 0.0
        %683 = vmatprep.subr.mxu0 0.0
        %684 = vmatpush2.msra.mxu0 0.0
        %685 = vmatprep.subr.mxu0 0.0
        %686 = vmatpush2.msra.mxu0 0.0
        %687 = vmatprep.subr.mxu0 0.0
        %688 = vmatpush2.msra.mxu0 0.0
        %689 = vmatprep.subr.mxu0 0.0
        %690 = vmatpush2.msra.mxu0 0.0
        %691 = vmatprep.subr.mxu0 0.0
        %692 = vmatpush2.msra.mxu0 0.0
        %693 = vmatprep.mubr.f32.mxu0 0.0
        %694 = vmatmul.mubr.f32.gmra.mxu0 %v417
        %v695 = vpop.f32.mrf.mxu0
        %v696 = vadd.f32 0.0, %v695
        %v697 = vpop.f32.mrf.mxu0
        %698 = vdwg.mxu0
        %vm699 = vcmask 60416
        %700 = vst.msk [vmem:[%s287] sm:$0xf] %vm699, %v486
        %701 = vst.msk [vmem:[%s287 + $0x4] sm:$0xf] %vm699, %v556
        %702 = vst.msk [vmem:[%s287 + $0x8] sm:$0xf] %vm699, %v626
        %703 = vst.msk [vmem:[%s287 + $0xc] sm:$0xf] %vm699, %v696
        %s704 = sand.u32 %s132, 1
        %s705 = scalar_lea.sflag [#allocation6], %s704
        %s706 = sand.u32 %s132, 1
        %s707 = smul.addr %s706, 16
        %s708 = scalar_lea.vmem [#allocation10], %s707
        // Predicated region
        $region45: #{tpu_custom_call.1} parent=31 // pred_check
          %p709 = pneg %p142
        $region46: #{tpu_custom_call.1} parent=31 // pred_check_branch
          %711 = sbr.rel (%p709) target = $region48
        $region47: #{tpu_custom_call.1} parent=31 // pred_region
          %s712 = smul.u32 4, %s32
          %s714 = ssub.s32 256, 256
          %715 = vsyncadd %s705, %s714
          %s716 = smul.addr %s33, 4
          %s717 = sadd.s32 %s712, %s716
          %s718 = smul.addr %s717, 64
          %s719 = scalar_lea.hbm %s4, %s718
          %s720 = sshll.u32 %s708, 4
          %s721 = int_to_ptr.vmem [resolvable:$true] %s720
          %726 = dma.vmem_to_hbm [thread:$0]  %s721, 256, %s719, %s705, 64, 64, 4
        $region48: #{tpu_custom_call.1} parent=31 // pred_fallthru
          _
      $region32: #{tpu_custom_call.1} parent=5 // pred_fallthru
        _
      %p727 = scmp.le.s32.totalorder 2, %s23
      // Predicated region
      $region49: #{tpu_custom_call.1} parent=5 // pred_check
        %p728 = pneg %p727
      $region50: #{tpu_custom_call.1} parent=5 // pred_check_branch
        %730 = sbr.rel (%p728) target = $region52
      $region51: #{tpu_custom_call.1} parent=5 // pred_region
        %s731 = ssub.s32 %s23, 2
        // Predicated region
        $region53: #{tpu_custom_call.1} parent=51 // pred_check
          %p732 = pneg %p148
        $region54: #{tpu_custom_call.1} parent=51 // pred_check_branch
          %734 = sbr.rel (%p732) target = $region56
        $region55: #{tpu_custom_call.1} parent=51 // pred_region
          %s735 = sand.u32 %s133, 1
          %s736 = scalar_lea.sflag [#allocation6], %s735
          %s737 = sand.u32 %s133, 1
          %s738 = smul.addr %s737, 16
          %s739 = scalar_lea.vmem [#allocation10], %s738
          %740 = dma.done %s736, 256
        $region56: #{tpu_custom_call.1} parent=51 // pred_fallthru
          _
      $region52: #{tpu_custom_call.1} parent=5 // pred_fallthru
        _
    $region6: #{tpu_custom_call.1} parent=1 // loop_footer
      %s27 = sadd.s32 1, %s23
    $region7: #{tpu_custom_call.1} parent=1 // loop_footer_branch
      %22 = sbr.rel target = $region3
    $region8: #{tpu_custom_call.1} parent=1 // loop_exit
      _
    %741 = vsyncpa [#allocation5], 1
    %s742 = scalar_lea.sflag [#allocation5], 1
    %743 = vsyncpa %s742, 1
    %744 = vsyncpa [#allocation8], 1
    %s745 = scalar_lea.sflag [#allocation8], 1
    %746 = vsyncpa %s745, 1
    %747 = vsyncpa [#allocation6], 1
    %s748 = scalar_lea.sflag [#allocation6], 1
    %749 = vsyncpa %s748, 1

</llo_original>
